<compile_context>
chip_gen: v7x
topology: tpu7x:2x2x1
jax: 0.10.0
libtpu: 0.0.40
codegen_flags: <defaults>
</compile_context>

<pallas_src>
import jax
import jax.numpy as jnp
from jax.experimental import pallas as pl
from jax.experimental.pallas import tpu as pltpu

LANE = 128


def _round_up(x, m):
    return ((x + m - 1) // m) * m


def _pad2(a, rows, cols):
    r, c = a.shape
    return jnp.pad(a, ((0, rows - r), (0, cols - c)))


# ------------------------- fused forward-pass kernel ------------------------

def _fused_kernel(patches_ref, q_ref, pool_ref,
                  convw_ref, convb_ref, clsw_ref, clsb_ref,
                  outwi_ref, outwq_ref, outb_ref, o_ref):
    # 1) conv (3x3, pad 1) as matmul + bias + ReLU.  bf16 MXU, f32 accumulate,
    #    f32 elementwise (v5e-safe).                         [M, Fp]
    conv = jnp.dot(patches_ref[...], convw_ref[...],
                   preferred_element_type=jnp.float32)
    conv = jnp.maximum(conv + convb_ref[...], 0.0)

    # 2) global average pool as a matmul with a block-diagonal pooling matrix
    #    (rows of batch n get weight 1/(H*W)).               [N, Fp]
    feat = jnp.dot(pool_ref[...], conv.astype(jnp.bfloat16),
                   preferred_element_type=jnp.float32)

    # 3) classifier -> image "class logits".                 [N, NCp]
    imageclass = jnp.dot(feat.astype(jnp.bfloat16), clsw_ref[...],
                         preferred_element_type=jnp.float32) + clsb_ref[...]

    # 4) outlayer(cat([imageclass, question])) as a split matmul
    #    (padded imageclass columns are exactly zero, so W_img rows beyond the
    #     true class count contribute nothing).              [N, OUTp]
    out = (jnp.dot(imageclass.astype(jnp.bfloat16), outwi_ref[...],
                   preferred_element_type=jnp.float32)
           + jnp.dot(q_ref[...].astype(jnp.bfloat16), outwq_ref[...],
                     preferred_element_type=jnp.float32)
           + outb_ref[...])
    o_ref[...] = out


# --------------------------- parameter preparation --------------------------

def make_params(key, *, in_ch=3, conv_ch=8, k=3, num_classes=16,
                q_dim=8, outsize=10):
    ks = jax.random.split(key, 6)
    return {
        # stand-in backbone (GoogLeNet replacement)
        "conv_w": 0.1 * jax.random.normal(ks[0], (conv_ch, in_ch, k, k), jnp.float32),
        "conv_b": 0.1 * jax.random.normal(ks[1], (conv_ch,), jnp.float32),
        "cls_w":  0.1 * jax.random.normal(ks[2], (num_classes, conv_ch), jnp.float32),
        "cls_b":  0.1 * jax.random.normal(ks[3], (num_classes,), jnp.float32),
        # self.outlayer = nn.Linear(insize, outsize), insize = num_classes + q_dim
        "out_w":  0.1 * jax.random.normal(ks[4], (outsize, num_classes + q_dim), jnp.float32),
        "out_b":  0.1 * jax.random.normal(ks[5], (outsize,), jnp.float32),
    }


def _prep_operands(params, n, hw):
    """One-time weight prep: flatten/transpose, zero-pad to lane-dense shapes,
    cast MXU operands to bf16 (biases stay f32)."""
    F, C, k, _ = params["conv_w"].shape
    num_classes = params["cls_w"].shape[0]
    insize, outsize = params["out_w"].shape[1], params["out_w"].shape[0]
    q_dim = insize - num_classes
    K = C * k * k

    Kp = _round_up(K, 8)
    Fp = _round_up(F, LANE)
    NCp = _round_up(num_classes, LANE)
    OUTp = _round_up(outsize, LANE)

    # conv weight flattened in (kh, kw, C) order -> matches NHWC im2col columns
    convw = params["conv_w"].transpose(0, 2, 3, 1).reshape(F, K).T        # [K, F]
    convw = _pad2(convw, Kp, Fp).astype(jnp.bfloat16)
    convb = jnp.pad(params["conv_b"], (0, Fp - F)).reshape(1, Fp).astype(jnp.float32)

    clsw = _pad2(params["cls_w"].T, Fp, NCp).astype(jnp.bfloat16)         # [Fp, NCp]
    clsb = jnp.pad(params["cls_b"], (0, NCp - num_classes)
                   ).reshape(1, NCp).astype(jnp.float32)

    outw = params["out_w"].T                                              # [insize, out]
    outwi = _pad2(outw[:num_classes], NCp, OUTp).astype(jnp.bfloat16)     # [NCp, OUTp]
    outwq = _pad2(outw[num_classes:], q_dim, OUTp).astype(jnp.bfloat16)   # [q,  OUTp]
    outb = jnp.pad(params["out_b"], (0, OUTp - outsize)
                   ).reshape(1, OUTp).astype(jnp.float32)

    # block-diagonal average-pool matrix: feat[n] = mean over the hw rows of batch n
    m = n * hw
    pool = (jnp.arange(m)[None, :] // hw) == jnp.arange(n)[:, None]
    pool = (pool.astype(jnp.float32) / hw).astype(jnp.bfloat16)           # [n, m]

    return {"convw": convw, "convb": convb, "clsw": clsw, "clsb": clsb,
            "outwi": outwi, "outwq": outwq, "outb": outb, "pool": pool,
            "dims": (Kp, Fp, NCp, OUTp)}


# ------------------------------ forward pass --------------------------------

def simple_baseline_net(params, image, question_encoding):
    """image: [N, C, H, W] (NCHW), question_encoding: [N, Q] -> [N, outsize]."""
    N, C, H, W = image.shape
    F, _, k, _ = params["conv_w"].shape
    pad = k // 2
    K = C * k * k
    outsize = params["out_w"].shape[0]

    ops = _prep_operands(params, N, H * W)
    Kp, Fp, NCp, OUTp = ops["dims"]

    # --- im2col glue in NHWC, (kh, kw, C) column order: shifted slices +
    #     lane-axis concat + collapse-leading-dims reshape (no 5-D transpose).
    x = jnp.transpose(image.astype(jnp.bfloat16), (0, 2, 3, 1))           # NHWC
    x = jnp.pad(x, ((0, 0), (pad, pad), (pad, pad), (0, 0)))
    cols = [x[:, dy:dy + H, dx:dx + W, :] for dy in range(k) for dx in range(k)]
    patches = jnp.concatenate(cols, axis=-1).reshape(N * H * W, K)
    patches = jnp.pad(patches, ((0, 0), (0, Kp - K)))                     # [M, Kp] bf16

    q = question_encoding.astype(jnp.float32)
    M, Q = N * H * W, q.shape[1]

    out_pad = pl.pallas_call(
        _fused_kernel,
        out_shape=jax.ShapeDtypeStruct((N, OUTp), jnp.float32),
        grid=(1,),
        in_specs=[
            pl.BlockSpec((M, Kp), lambda i: (0, 0)),       # patches
            pl.BlockSpec((N, Q), lambda i: (0, 0)),        # question
            pl.BlockSpec((N, M), lambda i: (0, 0)),        # pooling matrix
            pl.BlockSpec((Kp, Fp), lambda i: (0, 0)),      # conv weight
            pl.BlockSpec((1, Fp), lambda i: (0, 0)),       # conv bias
            pl.BlockSpec((Fp, NCp), lambda i: (0, 0)),     # cls weight
            pl.BlockSpec((1, NCp), lambda i: (0, 0)),      # cls bias
            pl.BlockSpec((NCp, OUTp), lambda i: (0, 0)),   # out weight (image part)
            pl.BlockSpec((Q, OUTp), lambda i: (0, 0)),     # out weight (question part)
            pl.BlockSpec((1, OUTp), lambda i: (0, 0)),     # out bias
        ],
        out_specs=pl.BlockSpec((N, OUTp), lambda i: (0, 0)),
        compiler_params=pltpu.CompilerParams(
            dimension_semantics=("arbitrary",)),
    )(patches, q, ops["pool"], ops["convw"], ops["convb"],
      ops["clsw"], ops["clsb"], ops["outwi"], ops["outwq"], ops["outb"])

    # slice back the valid (un-padded) output columns
    return out_pad[:, :outsize]


# --------------------------------- main --------------------------------------

if __name__ == "__main__":
    key = jax.random.PRNGKey(0)
    k_img, k_q, k_par = jax.random.split(key, 3)

    N, C, Hs, Ws = 2, 3, 16, 16          # small NCHW image
    q_dim, num_classes, outsize = 8, 16, 10

    image = jax.random.normal(k_img, (N, C, Hs, Ws), jnp.float32)
    question_encoding = jax.random.normal(k_q, (N, q_dim), jnp.float32)

    params = make_params(k_par, in_ch=C, conv_ch=8, k=3,
                         num_classes=num_classes, q_dim=q_dim, outsize=outsize)

    fwd = jax.jit(simple_baseline_net)
    out = fwd(params, image, question_encoding)
    out = jax.block_until_ready(out)
    assert out.shape == (N, outsize) and out.dtype == jnp.float32
    print("KERNEL_OK")
</pallas_src>

<mosaic_0001>
module attributes {stable_mosaic.version = 11 : i64} {
  func.func @_fused_kernel(%arg0: i32, %arg1: memref<512x32xbf16, #tpu.memory_space<vmem>>, %arg2: memref<2x8xf32, #tpu.memory_space<vmem>>, %arg3: memref<2x512xbf16, #tpu.memory_space<vmem>>, %arg4: memref<32x128xbf16, #tpu.memory_space<vmem>>, %arg5: memref<1x128xf32, #tpu.memory_space<vmem>>, %arg6: memref<128x128xbf16, #tpu.memory_space<vmem>>, %arg7: memref<1x128xf32, #tpu.memory_space<vmem>>, %arg8: memref<128x128xbf16, #tpu.memory_space<vmem>>, %arg9: memref<8x128xbf16, #tpu.memory_space<vmem>>, %arg10: memref<1x128xf32, #tpu.memory_space<vmem>>, %arg11: memref<2x128xf32, #tpu.memory_space<vmem>>) attributes {dimension_semantics = [#tpu.dimension_semantics<arbitrary>], iteration_bounds = array<i64: 1>, scalar_prefetch = 0 : i64, scratch_operands = 0 : i64, tpu.core_type = #tpu.core_type<tc>, window_params = [{pipeline_mode = #tpu.pipeline_mode<synchronous>, transform_indices = @transform_0, window_bounds = array<i64: 512, 32>}, {pipeline_mode = #tpu.pipeline_mode<synchronous>, transform_indices = @transform_1, window_bounds = array<i64: 2, 8>}, {pipeline_mode = #tpu.pipeline_mode<synchronous>, transform_indices = @transform_2, window_bounds = array<i64: 2, 512>}, {pipeline_mode = #tpu.pipeline_mode<synchronous>, transform_indices = @transform_3, window_bounds = array<i64: 32, 128>}, {pipeline_mode = #tpu.pipeline_mode<synchronous>, transform_indices = @transform_4, window_bounds = array<i64: 1, 128>}, {pipeline_mode = #tpu.pipeline_mode<synchronous>, transform_indices = @transform_5, window_bounds = array<i64: 128, 128>}, {pipeline_mode = #tpu.pipeline_mode<synchronous>, transform_indices = @transform_6, window_bounds = array<i64: 1, 128>}, {pipeline_mode = #tpu.pipeline_mode<synchronous>, transform_indices = @transform_7, window_bounds = array<i64: 128, 128>}, {pipeline_mode = #tpu.pipeline_mode<synchronous>, transform_indices = @transform_8, window_bounds = array<i64: 8, 128>}, {pipeline_mode = #tpu.pipeline_mode<synchronous>, transform_indices = @transform_9, window_bounds = array<i64: 1, 128>}, {pipeline_mode = #tpu.pipeline_mode<synchronous>, transform_indices = @transform_10, window_bounds = array<i64: 2, 128>}]} {
    %c0 = arith.constant 0 : index
    %c0_0 = arith.constant 0 : index
    %0 = vector.load %arg1[%c0, %c0_0] : memref<512x32xbf16, #tpu.memory_space<vmem>>, vector<512x32xbf16>
    %c0_1 = arith.constant 0 : index
    %c0_2 = arith.constant 0 : index
    %1 = vector.load %arg4[%c0_1, %c0_2] : memref<32x128xbf16, #tpu.memory_space<vmem>>, vector<32x128xbf16>
    %cst = arith.constant dense<0.000000e+00> : vector<512x128xf32>
    %2 = tpu.matmul %0, %1, %cst {dimension_numbers = #tpu.dot_dimension_numbers<[1], [0], [0], [1], [0, 0, 1, 1], [], []>} : vector<512x32xbf16>, vector<32x128xbf16>, vector<512x128xf32> -> vector<512x128xf32>
    %c0_3 = arith.constant 0 : index
    %c0_4 = arith.constant 0 : index
    %3 = vector.load %arg5[%c0_3, %c0_4] : memref<1x128xf32, #tpu.memory_space<vmem>>, vector<1x128xf32>
    %4 = vector.broadcast %3 : vector<1x128xf32> to vector<512x128xf32>
    %5 = arith.addf %2, %4 : vector<512x128xf32>
    %cst_5 = arith.constant 0.000000e+00 : f32
    %6 = vector.broadcast %cst_5 : f32 to vector<512x128xf32>
    %7 = arith.maximumf %5, %6 : vector<512x128xf32>
    %c0_6 = arith.constant 0 : index
    %c0_7 = arith.constant 0 : index
    %8 = vector.load %arg3[%c0_6, %c0_7] : memref<2x512xbf16, #tpu.memory_space<vmem>>, vector<2x512xbf16>
    %9 = arith.truncf %7 : vector<512x128xf32> to vector<512x128xbf16>
    %cst_8 = arith.constant dense<0.000000e+00> : vector<2x128xf32>
    %10 = tpu.matmul %8, %9, %cst_8 {dimension_numbers = #tpu.dot_dimension_numbers<[1], [0], [0], [1], [0, 0, 1, 1], [], []>} : vector<2x512xbf16>, vector<512x128xbf16>, vector<2x128xf32> -> vector<2x128xf32>
    %11 = arith.truncf %10 : vector<2x128xf32> to vector<2x128xbf16>
    %c0_9 = arith.constant 0 : index
    %c0_10 = arith.constant 0 : index
    %12 = vector.load %arg6[%c0_9, %c0_10] : memref<128x128xbf16, #tpu.memory_space<vmem>>, vector<128x128xbf16>
    %cst_11 = arith.constant dense<0.000000e+00> : vector<2x128xf32>
    %13 = tpu.matmul %11, %12, %cst_11 {dimension_numbers = #tpu.dot_dimension_numbers<[1], [0], [0], [1], [0, 0, 1, 1], [], []>} : vector<2x128xbf16>, vector<128x128xbf16>, vector<2x128xf32> -> vector<2x128xf32>
    %c0_12 = arith.constant 0 : index
    %c0_13 = arith.constant 0 : index
    %14 = vector.load %arg7[%c0_12, %c0_13] : memref<1x128xf32, #tpu.memory_space<vmem>>, vector<1x128xf32>
    %15 = vector.broadcast %14 : vector<1x128xf32> to vector<2x128xf32>
    %16 = arith.addf %13, %15 : vector<2x128xf32>
    %17 = arith.truncf %16 : vector<2x128xf32> to vector<2x128xbf16>
    %c0_14 = arith.constant 0 : index
    %c0_15 = arith.constant 0 : index
    %18 = vector.load %arg8[%c0_14, %c0_15] : memref<128x128xbf16, #tpu.memory_space<vmem>>, vector<128x128xbf16>
    %cst_16 = arith.constant dense<0.000000e+00> : vector<2x128xf32>
    %19 = tpu.matmul %17, %18, %cst_16 {dimension_numbers = #tpu.dot_dimension_numbers<[1], [0], [0], [1], [0, 0, 1, 1], [], []>} : vector<2x128xbf16>, vector<128x128xbf16>, vector<2x128xf32> -> vector<2x128xf32>
    %c0_17 = arith.constant 0 : index
    %c0_18 = arith.constant 0 : index
    %20 = vector.load %arg2[%c0_17, %c0_18] : memref<2x8xf32, #tpu.memory_space<vmem>>, vector<2x8xf32>
    %21 = arith.truncf %20 : vector<2x8xf32> to vector<2x8xbf16>
    %c0_19 = arith.constant 0 : index
    %c0_20 = arith.constant 0 : index
    %22 = vector.load %arg9[%c0_19, %c0_20] : memref<8x128xbf16, #tpu.memory_space<vmem>>, vector<8x128xbf16>
    %cst_21 = arith.constant dense<0.000000e+00> : vector<2x128xf32>
    %23 = tpu.matmul %21, %22, %cst_21 {dimension_numbers = #tpu.dot_dimension_numbers<[1], [0], [0], [1], [0, 0, 1, 1], [], []>} : vector<2x8xbf16>, vector<8x128xbf16>, vector<2x128xf32> -> vector<2x128xf32>
    %24 = arith.addf %19, %23 : vector<2x128xf32>
    %c0_22 = arith.constant 0 : index
    %c0_23 = arith.constant 0 : index
    %25 = vector.load %arg10[%c0_22, %c0_23] : memref<1x128xf32, #tpu.memory_space<vmem>>, vector<1x128xf32>
    %26 = vector.broadcast %25 : vector<1x128xf32> to vector<2x128xf32>
    %27 = arith.addf %24, %26 : vector<2x128xf32>
    %c0_24 = arith.constant 0 : index
    %c0_25 = arith.constant 0 : index
    %28 = vector.load %arg11[%c0_24, %c0_25] : memref<2x128xf32, #tpu.memory_space<vmem>>, vector<2x128xf32>
    tpu.vector_store %arg11[%c0_24, %c0_25], %27 {strides = array<i32>} : memref<2x128xf32, #tpu.memory_space<vmem>>, vector<2x128xf32>,
    return
  }
  func.func @transform_0(%arg0: i32) -> (i32, i32) {
    %c0_i32 = arith.constant 0 : i32
    %c0_i32_0 = arith.constant 0 : i32
    %c0_i32_1 = arith.constant 0 : i32
    return %c0_i32, %c0_i32_0 : i32, i32
  }
  func.func @transform_1(%arg0: i32) -> (i32, i32) {
    %c0_i32 = arith.constant 0 : i32
    %c0_i32_0 = arith.constant 0 : i32
    %c0_i32_1 = arith.constant 0 : i32
    return %c0_i32, %c0_i32_0 : i32, i32
  }
  func.func @transform_2(%arg0: i32) -> (i32, i32) {
    %c0_i32 = arith.constant 0 : i32
    %c0_i32_0 = arith.constant 0 : i32
    %c0_i32_1 = arith.constant 0 : i32
    return %c0_i32, %c0_i32_0 : i32, i32
  }
  func.func @transform_3(%arg0: i32) -> (i32, i32) {
    %c0_i32 = arith.constant 0 : i32
    %c0_i32_0 = arith.constant 0 : i32
    %c0_i32_1 = arith.constant 0 : i32
    return %c0_i32, %c0_i32_0 : i32, i32
  }
  func.func @transform_4(%arg0: i32) -> (i32, i32) {
    %c0_i32 = arith.constant 0 : i32
    %c0_i32_0 = arith.constant 0 : i32
    %c0_i32_1 = arith.constant 0 : i32
    return %c0_i32, %c0_i32_0 : i32, i32
  }
  func.func @transform_5(%arg0: i32) -> (i32, i32) {
    %c0_i32 = arith.constant 0 : i32
    %c0_i32_0 = arith.constant 0 : i32
    %c0_i32_1 = arith.constant 0 : i32
    return %c0_i32, %c0_i32_0 : i32, i32
  }
  func.func @transform_6(%arg0: i32) -> (i32, i32) {
    %c0_i32 = arith.constant 0 : i32
    %c0_i32_0 = arith.constant 0 : i32
    %c0_i32_1 = arith.constant 0 : i32
    return %c0_i32, %c0_i32_0 : i32, i32
  }
  func.func @transform_7(%arg0: i32) -> (i32, i32) {
    %c0_i32 = arith.constant 0 : i32
    %c0_i32_0 = arith.constant 0 : i32
    %c0_i32_1 = arith.constant 0 : i32
    return %c0_i32, %c0_i32_0 : i32, i32
  }
  func.func @transform_8(%arg0: i32) -> (i32, i32) {
    %c0_i32 = arith.constant 0 : i32
    %c0_i32_0 = arith.constant 0 : i32
    %c0_i32_1 = arith.constant 0 : i32
    return %c0_i32, %c0_i32_0 : i32, i32
  }
  func.func @transform_9(%arg0: i32) -> (i32, i32) {
    %c0_i32 = arith.constant 0 : i32
    %c0_i32_0 = arith.constant 0 : i32
    %c0_i32_1 = arith.constant 0 : i32
    return %c0_i32, %c0_i32_0 : i32, i32
  }
  func.func @transform_10(%arg0: i32) -> (i32, i32) {
    %c0_i32 = arith.constant 0 : i32
    %c0_i32_0 = arith.constant 0 : i32
    %c0_i32_1 = arith.constant 0 : i32
    return %c0_i32, %c0_i32_0 : i32, i32
  }
}

</mosaic_0001>

<llo_original>
// kernel: simple_baseline_net.1
$region0: #{simple_baseline_net.1}
  #allocation0 [shape = 'u32[]', space=smem, size = 0x4, offset = 0x4, fixed_abs, tag = 'smem constant byte address 0x4 - core index']
  #allocation1 [shape = 'u32[144,128]{1,0:T(1,128)}', space=vmem, size = 0x12000, scoped, tag = 'internal scratch']
  %s0 = inlined_call_operand.vmem [shape: bf16[512,32], index: 0, kind: input, shape index: {}]
  %s1 = inlined_call_operand.vmem [shape: f32[2,8], index: 1, kind: input, shape index: {}]
  %s2 = inlined_call_operand.vmem [shape: bf16[2,512], index: 2, kind: input, shape index: {}]
  %s3 = inlined_call_operand.vmem [shape: bf16[32,128], index: 3, kind: input, shape index: {}]
  %s4 = inlined_call_operand.vmem [shape: f32[1,128], index: 4, kind: input, shape index: {}]
  %s5 = inlined_call_operand.vmem [shape: bf16[128,128], index: 5, kind: input, shape index: {}]
  %s6 = inlined_call_operand.vmem [shape: f32[1,128], index: 6, kind: input, shape index: {}]
  %s7 = inlined_call_operand.vmem [shape: bf16[128,128], index: 7, kind: input, shape index: {}]
  %s8 = inlined_call_operand.vmem [shape: bf16[8,128], index: 8, kind: input, shape index: {}]
  %s9 = inlined_call_operand.vmem [shape: f32[1,128], index: 9, kind: input, shape index: {}]
  %s10 = inlined_call_operand.hbm [shape: f32[2,128], index: 10, kind: output, shape index: {}]
  %s11 = sld [smem:[#allocation0]]
  $region50: #{simple_baseline_net.1} parent=0
    _
  %s13 = ssub.s32 1, %s11
  %s14 = scalar_select 0, %s13, %s11
  $region1: #{simple_baseline_net.1} parent=0
    #allocation2 [shape = 'u8[1024]{0}', space=vmem, size = 0x400, scoped, tag = 'output window, operand 0, single buffered']
    #allocation3 [shape = 's32[1]{0}', space=sflag, size = 0x4, scoped, tag = 'scoped memory for simple_baseline_net.1']
    %15 = vsyncpa [#allocation3], 0
    // Predicated region
    $region2: #{simple_baseline_net.1} parent=1 // pred_check
      _
    $region3: #{simple_baseline_net.1} parent=1 // pred_check_branch
      %17 = sbr.rel (0) target = $region5
    $region4: #{simple_baseline_net.1} parent=1 // pred_region
      _
    $region5: #{simple_baseline_net.1} parent=1 // pred_fallthru
      _
    // Predicated region
    $region6: #{simple_baseline_net.1} parent=1 // pred_check
      _
    $region7: #{simple_baseline_net.1} parent=1 // pred_check_branch
      %19 = sbr.rel (0) target = $region9
    $region8: #{simple_baseline_net.1} parent=1 // pred_region
      _
    $region9: #{simple_baseline_net.1} parent=1 // pred_fallthru
      _
    // Predicated region
    $region10: #{simple_baseline_net.1} parent=1 // pred_check
      _
    $region11: #{simple_baseline_net.1} parent=1 // pred_check_branch
      %21 = sbr.rel (0) target = $region13
    $region12: #{simple_baseline_net.1} parent=1 // pred_region
      _
    $region13: #{simple_baseline_net.1} parent=1 // pred_fallthru
      _
    // Predicated region
    $region14: #{simple_baseline_net.1} parent=1 // pred_check
      _
    $region15: #{simple_baseline_net.1} parent=1 // pred_check_branch
      %23 = sbr.rel (0) target = $region17
    $region16: #{simple_baseline_net.1} parent=1 // pred_region
      _
    $region17: #{simple_baseline_net.1} parent=1 // pred_fallthru
      _
    // Predicated region
    $region18: #{simple_baseline_net.1} parent=1 // pred_check
      _
    $region19: #{simple_baseline_net.1} parent=1 // pred_check_branch
      %25 = sbr.rel (0) target = $region21
    $region20: #{simple_baseline_net.1} parent=1 // pred_region
      _
    $region21: #{simple_baseline_net.1} parent=1 // pred_fallthru
      _
    // Predicated region
    $region22: #{simple_baseline_net.1} parent=1 // pred_check
      _
    $region23: #{simple_baseline_net.1} parent=1 // pred_check_branch
      %27 = sbr.rel (0) target = $region25
    $region24: #{simple_baseline_net.1} parent=1 // pred_region
      _
    $region25: #{simple_baseline_net.1} parent=1 // pred_fallthru
      _
    // Predicated region
    $region26: #{simple_baseline_net.1} parent=1 // pred_check
      _
    $region27: #{simple_baseline_net.1} parent=1 // pred_check_branch
      %29 = sbr.rel (0) target = $region29
    $region28: #{simple_baseline_net.1} parent=1 // pred_region
      _
    $region29: #{simple_baseline_net.1} parent=1 // pred_fallthru
      _
    // Predicated region
    $region30: #{simple_baseline_net.1} parent=1 // pred_check
      _
    $region31: #{simple_baseline_net.1} parent=1 // pred_check_branch
      %31 = sbr.rel (0) target = $region33
    $region32: #{simple_baseline_net.1} parent=1 // pred_region
      _
    $region33: #{simple_baseline_net.1} parent=1 // pred_fallthru
      _
    // Predicated region
    $region34: #{simple_baseline_net.1} parent=1 // pred_check
      _
    $region35: #{simple_baseline_net.1} parent=1 // pred_check_branch
      %33 = sbr.rel (0) target = $region37
    $region36: #{simple_baseline_net.1} parent=1 // pred_region
      _
    $region37: #{simple_baseline_net.1} parent=1 // pred_fallthru
      _
    // Predicated region
    $region38: #{simple_baseline_net.1} parent=1 // pred_check
      _
    $region39: #{simple_baseline_net.1} parent=1 // pred_check_branch
      %35 = sbr.rel (0) target = $region41
    $region40: #{simple_baseline_net.1} parent=1 // pred_region
      _
    $region41: #{simple_baseline_net.1} parent=1 // pred_fallthru
      _
    %v37 = vld [vmem:[%s0] sm:$0xf]
    %v38 = vld [vmem:[%s0 + $0x4] sm:$0xf]
    %v39 = vld [vmem:[%s0 + $0x8] sm:$0xf]
    %v40 = vld [vmem:[%s0 + $0xc] sm:$0xf]
    %v41 = vld [vmem:[%s0 + $0x10] sm:$0xf]
    %v42 = vld [vmem:[%s0 + $0x14] sm:$0xf]
    %v43 = vld [vmem:[%s0 + $0x18] sm:$0xf]
    %v44 = vld [vmem:[%s0 + $0x1c] sm:$0xf]
    %v45 = vld [vmem:[%s0 + $0x20] sm:$0xf]
    %v46 = vld [vmem:[%s0 + $0x24] sm:$0xf]
    %v47 = vld [vmem:[%s0 + $0x28] sm:$0xf]
    %v48 = vld [vmem:[%s0 + $0x2c] sm:$0xf]
    %v49 = vld [vmem:[%s0 + $0x30] sm:$0xf]
    %v50 = vld [vmem:[%s0 + $0x34] sm:$0xf]
    %v51 = vld [vmem:[%s0 + $0x38] sm:$0xf]
    %v52 = vld [vmem:[%s0 + $0x3c] sm:$0xf]
    %v53 = vld [vmem:[%s0 + $0x40] sm:$0xf]
    %v54 = vld [vmem:[%s0 + $0x44] sm:$0xf]
    %v55 = vld [vmem:[%s0 + $0x48] sm:$0xf]
    %v56 = vld [vmem:[%s0 + $0x4c] sm:$0xf]
    %v57 = vld [vmem:[%s0 + $0x50] sm:$0xf]
    %v58 = vld [vmem:[%s0 + $0x54] sm:$0xf]
    %v59 = vld [vmem:[%s0 + $0x58] sm:$0xf]
    %v60 = vld [vmem:[%s0 + $0x5c] sm:$0xf]
    %v61 = vld [vmem:[%s0 + $0x60] sm:$0xf]
    %v62 = vld [vmem:[%s0 + $0x64] sm:$0xf]
    %v63 = vld [vmem:[%s0 + $0x68] sm:$0xf]
    %v64 = vld [vmem:[%s0 + $0x6c] sm:$0xf]
    %v65 = vld [vmem:[%s0 + $0x70] sm:$0xf]
    %v66 = vld [vmem:[%s0 + $0x74] sm:$0xf]
    %v67 = vld [vmem:[%s0 + $0x78] sm:$0xf]
    %v68 = vld [vmem:[%s0 + $0x7c] sm:$0xf]
    %v69 = vld [vmem:[%s0 + $0x80] sm:$0xf]
    %v70 = vld [vmem:[%s0 + $0x84] sm:$0xf]
    %v71 = vld [vmem:[%s0 + $0x88] sm:$0xf]
    %v72 = vld [vmem:[%s0 + $0x8c] sm:$0xf]
    %v73 = vld [vmem:[%s0 + $0x90] sm:$0xf]
    %v74 = vld [vmem:[%s0 + $0x94] sm:$0xf]
    %v75 = vld [vmem:[%s0 + $0x98] sm:$0xf]
    %v76 = vld [vmem:[%s0 + $0x9c] sm:$0xf]
    %v77 = vld [vmem:[%s0 + $0xa0] sm:$0xf]
    %v78 = vld [vmem:[%s0 + $0xa4] sm:$0xf]
    %v79 = vld [vmem:[%s0 + $0xa8] sm:$0xf]
    %v80 = vld [vmem:[%s0 + $0xac] sm:$0xf]
    %v81 = vld [vmem:[%s0 + $0xb0] sm:$0xf]
    %v82 = vld [vmem:[%s0 + $0xb4] sm:$0xf]
    %v83 = vld [vmem:[%s0 + $0xb8] sm:$0xf]
    %v84 = vld [vmem:[%s0 + $0xbc] sm:$0xf]
    %v85 = vld [vmem:[%s0 + $0xc0] sm:$0xf]
    %v86 = vld [vmem:[%s0 + $0xc4] sm:$0xf]
    %v87 = vld [vmem:[%s0 + $0xc8] sm:$0xf]
    %v88 = vld [vmem:[%s0 + $0xcc] sm:$0xf]
    %v89 = vld [vmem:[%s0 + $0xd0] sm:$0xf]
    %v90 = vld [vmem:[%s0 + $0xd4] sm:$0xf]
    %v91 = vld [vmem:[%s0 + $0xd8] sm:$0xf]
    %v92 = vld [vmem:[%s0 + $0xdc] sm:$0xf]
    %v93 = vld [vmem:[%s0 + $0xe0] sm:$0xf]
    %v94 = vld [vmem:[%s0 + $0xe4] sm:$0xf]
    %v95 = vld [vmem:[%s0 + $0xe8] sm:$0xf]
    %v96 = vld [vmem:[%s0 + $0xec] sm:$0xf]
    %v97 = vld [vmem:[%s0 + $0xf0] sm:$0xf]
    %v98 = vld [vmem:[%s0 + $0xf4] sm:$0xf]
    %v99 = vld [vmem:[%s0 + $0xf8] sm:$0xf]
    %v100 = vld [vmem:[%s0 + $0xfc] sm:$0xf]
    %v101 = vld [vmem:[%s3] sm:$0xf]
    %v102 = vld [vmem:[%s3 + $0x4] sm:$0xf]
    %v103 = vld [vmem:[%s3 + $0x8] sm:$0xf]
    %v104 = vld [vmem:[%s3 + $0xc] sm:$0xf]
    %v105 = vld [vmem:[%s4] sm:$0x1]
    %v107 = vlaneseq
    %v108 = vshrl.u32 %v107, 7
    %v109 = vsub.s32 0, %v108
    %v110 = vrot.slane %v105, %v109
    %v176 = vunpack.c.l.b16 %v37
    %v177 = vunpack.c.l.b16 %v38
    %v178 = vunpack.c.l.b16 %v39
    %v179 = vunpack.c.l.b16 %v40
    %v180 = vunpack.c.l.b16 %v41
    %v181 = vunpack.c.l.b16 %v42
    %v182 = vunpack.c.l.b16 %v43
    %v183 = vunpack.c.l.b16 %v44
    %v184 = vunpack.c.l.b16 %v45
    %v185 = vunpack.c.l.b16 %v46
    %v186 = vunpack.c.l.b16 %v47
    %v187 = vunpack.c.l.b16 %v48
    %v188 = vunpack.c.l.b16 %v49
    %v189 = vunpack.c.l.b16 %v50
    %v190 = vunpack.c.l.b16 %v51
    %v191 = vunpack.c.l.b16 %v52
    %v192 = vunpack.c.l.b16 %v53
    %v193 = vunpack.c.l.b16 %v54
    %v194 = vunpack.c.l.b16 %v55
    %v195 = vunpack.c.l.b16 %v56
    %v196 = vunpack.c.l.b16 %v57
    %v197 = vunpack.c.l.b16 %v58
    %v198 = vunpack.c.l.b16 %v59
    %v199 = vunpack.c.l.b16 %v60
    %v200 = vunpack.c.l.b16 %v61
    %v201 = vunpack.c.l.b16 %v62
    %v202 = vunpack.c.l.b16 %v63
    %v203 = vunpack.c.l.b16 %v64
    %v204 = vunpack.c.l.b16 %v65
    %v205 = vunpack.c.l.b16 %v66
    %v206 = vunpack.c.l.b16 %v67
    %v207 = vunpack.c.l.b16 %v68
    %v208 = vunpack.c.l.b16 %v69
    %v209 = vunpack.c.l.b16 %v70
    %v210 = vunpack.c.l.b16 %v71
    %v211 = vunpack.c.l.b16 %v72
    %v212 = vunpack.c.l.b16 %v73
    %v213 = vunpack.c.l.b16 %v74
    %v214 = vunpack.c.l.b16 %v75
    %v215 = vunpack.c.l.b16 %v76
    %v216 = vunpack.c.l.b16 %v77
    %v217 = vunpack.c.l.b16 %v78
    %v218 = vunpack.c.l.b16 %v79
    %v219 = vunpack.c.l.b16 %v80
    %v220 = vunpack.c.l.b16 %v81
    %v221 = vunpack.c.l.b16 %v82
    %v222 = vunpack.c.l.b16 %v83
    %v223 = vunpack.c.l.b16 %v84
    %v224 = vunpack.c.l.b16 %v85
    %v225 = vunpack.c.l.b16 %v86
    %v226 = vunpack.c.l.b16 %v87
    %v227 = vunpack.c.l.b16 %v88
    %v228 = vunpack.c.l.b16 %v89
    %v229 = vunpack.c.l.b16 %v90
    %v230 = vunpack.c.l.b16 %v91
    %v231 = vunpack.c.l.b16 %v92
    %v232 = vunpack.c.l.b16 %v93
    %v233 = vunpack.c.l.b16 %v94
    %v234 = vunpack.c.l.b16 %v95
    %v235 = vunpack.c.l.b16 %v96
    %v236 = vunpack.c.l.b16 %v97
    %v237 = vunpack.c.l.b16 %v98
    %v238 = vunpack.c.l.b16 %v99
    %v239 = vunpack.c.l.b16 %v100
    %v240 = vpack.c.b16 %v177, %v176
    %v241 = vpack.c.b16 %v179, %v178
    %v242 = vpack.c.b16 %v181, %v180
    %v243 = vpack.c.b16 %v183, %v182
    %v244 = vpack.c.b16 %v185, %v184
    %v245 = vpack.c.b16 %v187, %v186
    %v246 = vpack.c.b16 %v189, %v188
    %v247 = vpack.c.b16 %v191, %v190
    %v248 = vpack.c.b16 %v193, %v192
    %v249 = vpack.c.b16 %v195, %v194
    %v250 = vpack.c.b16 %v197, %v196
    %v251 = vpack.c.b16 %v199, %v198
    %v252 = vpack.c.b16 %v201, %v200
    %v253 = vpack.c.b16 %v203, %v202
    %v254 = vpack.c.b16 %v205, %v204
    %v255 = vpack.c.b16 %v207, %v206
    %v256 = vpack.c.b16 %v209, %v208
    %v257 = vpack.c.b16 %v211, %v210
    %v258 = vpack.c.b16 %v213, %v212
    %v259 = vpack.c.b16 %v215, %v214
    %v260 = vpack.c.b16 %v217, %v216
    %v261 = vpack.c.b16 %v219, %v218
    %v262 = vpack.c.b16 %v221, %v220
    %v263 = vpack.c.b16 %v223, %v222
    %v264 = vpack.c.b16 %v225, %v224
    %v265 = vpack.c.b16 %v227, %v226
    %v266 = vpack.c.b16 %v229, %v228
    %v267 = vpack.c.b16 %v231, %v230
    %v268 = vpack.c.b16 %v233, %v232
    %v269 = vpack.c.b16 %v235, %v234
    %v270 = vpack.c.b16 %v237, %v236
    %v271 = vpack.c.b16 %v239, %v238
    %v276 = vunpack.c.l.b16 %v101
    %v277 = vunpack.c.l.b16 %v102
    %v278 = vunpack.c.l.b16 %v103
    %v279 = vunpack.c.l.b16 %v104
    %v280 = vpack.c.b16 %v277, %v276
    %v281 = vpack.c.b16 %v279, %v278
    %vm284 = vcmask 261120
    %v286 = vsel %vm284, %v240, 0
    %v289 = vsel %vm284, %v241, 0
    %v292 = vsel %vm284, %v242, 0
    %v295 = vsel %vm284, %v243, 0
    %v298 = vsel %vm284, %v244, 0
    %v301 = vsel %vm284, %v245, 0
    %v304 = vsel %vm284, %v246, 0
    %v307 = vsel %vm284, %v247, 0
    %v310 = vsel %vm284, %v248, 0
    %v313 = vsel %vm284, %v249, 0
    %v316 = vsel %vm284, %v250, 0
    %v319 = vsel %vm284, %v251, 0
    %v322 = vsel %vm284, %v252, 0
    %v325 = vsel %vm284, %v253, 0
    %v328 = vsel %vm284, %v254, 0
    %v331 = vsel %vm284, %v255, 0
    %v334 = vsel %vm284, %v256, 0
    %v337 = vsel %vm284, %v257, 0
    %v340 = vsel %vm284, %v258, 0
    %v343 = vsel %vm284, %v259, 0
    %v346 = vsel %vm284, %v260, 0
    %v349 = vsel %vm284, %v261, 0
    %v352 = vsel %vm284, %v262, 0
    %v355 = vsel %vm284, %v263, 0
    %v358 = vsel %vm284, %v264, 0
    %v361 = vsel %vm284, %v265, 0
    %v364 = vsel %vm284, %v266, 0
    %v367 = vsel %vm284, %v267, 0
    %v370 = vsel %vm284, %v268, 0
    %v373 = vsel %vm284, %v269, 0
    %v376 = vsel %vm284, %v270, 0
    %v379 = vsel %vm284, %v271, 0
    %381 = vmatprep.subr.bf16.mxu0 0
    %382 = vmatpush1.bf16.msra.mxu0 %v280
    %383 = vmatprep.subr.bf16.mxu0 0
    %384 = vmatpush1.bf16.msra.mxu0 %v281
    %385 = vmatprep.subr.bf16.mxu0 0
    %386 = vmatpush1.bf16.msra.mxu0 0
    %387 = vmatprep.subr.bf16.mxu0 0
    %388 = vmatpush1.bf16.msra.mxu0 0
    %389 = vmatprep.subr.bf16.mxu0 0
    %390 = vmatpush1.bf16.msra.mxu0 0
    %391 = vmatprep.subr.bf16.mxu0 0
    %392 = vmatpush1.bf16.msra.mxu0 0
    %393 = vmatprep.subr.bf16.mxu0 0
    %394 = vmatpush1.bf16.msra.mxu0 0
    %395 = vmatprep.subr.bf16.mxu0 0
    %396 = vmatpush1.bf16.msra.mxu0 0
    %397 = vmatprep.subr.bf16.mxu0 0
    %398 = vmatpush1.bf16.msra.mxu0 0
    %399 = vmatprep.subr.bf16.mxu0 0
    %400 = vmatpush1.bf16.msra.mxu0 0
    %401 = vmatprep.subr.bf16.mxu0 0
    %402 = vmatpush1.bf16.msra.mxu0 0
    %403 = vmatprep.subr.bf16.mxu0 0
    %404 = vmatpush1.bf16.msra.mxu0 0
    %405 = vmatprep.subr.bf16.mxu0 0
    %406 = vmatpush1.bf16.msra.mxu0 0
    %407 = vmatprep.subr.bf16.mxu0 0
    %408 = vmatpush1.bf16.msra.mxu0 0
    %409 = vmatprep.subr.bf16.mxu0 0
    %410 = vmatpush1.bf16.msra.mxu0 0
    %411 = vmatprep.subr.bf16.mxu0 0
    %412 = vmatpush1.bf16.msra.mxu0 0
    %413 = vmatprep.mubr.bf16.mxu0 0
    %414 = vmatmul.mubr.bf16.gmra.mrb[0].mxu0 %v286
    %v415 = vpop.f32.mrb[0].mxu0
    %v416 = vadd.f32 %v110, %v415
    %v417 = vpop.f32.mrb[0].mxu0
    %v418 = vpop.f32.mrb[0].mxu0
    %v419 = vadd.f32 %v110, %v418
    %v420 = vpop.f32.mrb[0].mxu0
    %421 = vmatprep.mubr.bf16.mxu0 0
    %422 = vmatmul.mubr.bf16.gmra.mrb[0].mxu0 %v289
    %v423 = vpop.f32.mrb[0].mxu0
    %v424 = vadd.f32 %v110, %v423
    %v425 = vpop.f32.mrb[0].mxu0
    %v426 = vpop.f32.mrb[0].mxu0
    %v427 = vadd.f32 %v110, %v426
    %v428 = vpop.f32.mrb[0].mxu0
    %429 = vmatprep.mubr.bf16.mxu0 0
    %430 = vmatmul.mubr.bf16.gmra.mrb[0].mxu0 %v292
    %v431 = vpop.f32.mrb[0].mxu0
    %v432 = vadd.f32 %v110, %v431
    %v433 = vpop.f32.mrb[0].mxu0
    %v434 = vpop.f32.mrb[0].mxu0
    %v435 = vadd.f32 %v110, %v434
    %v436 = vpop.f32.mrb[0].mxu0
    %437 = vmatprep.mubr.bf16.mxu0 0
    %438 = vmatmul.mubr.bf16.gmra.mrb[0].mxu0 %v295
    %v439 = vpop.f32.mrb[0].mxu0
    %v440 = vadd.f32 %v110, %v439
    %v441 = vpop.f32.mrb[0].mxu0
    %v442 = vpop.f32.mrb[0].mxu0
    %v443 = vadd.f32 %v110, %v442
    %v444 = vpop.f32.mrb[0].mxu0
    %445 = vmatprep.mubr.bf16.mxu0 0
    %446 = vmatmul.mubr.bf16.gmra.mrb[0].mxu0 %v298
    %v447 = vpop.f32.mrb[0].mxu0
    %v448 = vadd.f32 %v110, %v447
    %v449 = vpop.f32.mrb[0].mxu0
    %v450 = vpop.f32.mrb[0].mxu0
    %v451 = vadd.f32 %v110, %v450
    %v452 = vpop.f32.mrb[0].mxu0
    %453 = vmatprep.mubr.bf16.mxu0 0
    %454 = vmatmul.mubr.bf16.gmra.mrb[0].mxu0 %v301
    %v455 = vpop.f32.mrb[0].mxu0
    %v456 = vadd.f32 %v110, %v455
    %v457 = vpop.f32.mrb[0].mxu0
    %v458 = vpop.f32.mrb[0].mxu0
    %v459 = vadd.f32 %v110, %v458
    %v460 = vpop.f32.mrb[0].mxu0
    %461 = vmatprep.mubr.bf16.mxu0 0
    %462 = vmatmul.mubr.bf16.gmra.mrb[0].mxu0 %v304
    %v463 = vpop.f32.mrb[0].mxu0
    %v464 = vadd.f32 %v110, %v463
    %v465 = vpop.f32.mrb[0].mxu0
    %v466 = vpop.f32.mrb[0].mxu0
    %v467 = vadd.f32 %v110, %v466
    %v468 = vpop.f32.mrb[0].mxu0
    %469 = vmatprep.mubr.bf16.mxu0 0
    %470 = vmatmul.mubr.bf16.gmra.mrb[0].mxu0 %v307
    %v471 = vpop.f32.mrb[0].mxu0
    %v472 = vadd.f32 %v110, %v471
    %v473 = vpop.f32.mrb[0].mxu0
    %v474 = vpop.f32.mrb[0].mxu0
    %v475 = vadd.f32 %v110, %v474
    %v476 = vpop.f32.mrb[0].mxu0
    %477 = vmatprep.mubr.bf16.mxu0 0
    %478 = vmatmul.mubr.bf16.gmra.mrb[0].mxu0 %v310
    %v479 = vpop.f32.mrb[0].mxu0
    %v480 = vadd.f32 %v110, %v479
    %v481 = vpop.f32.mrb[0].mxu0
    %v482 = vpop.f32.mrb[0].mxu0
    %v483 = vadd.f32 %v110, %v482
    %v484 = vpop.f32.mrb[0].mxu0
    %485 = vmatprep.mubr.bf16.mxu0 0
    %486 = vmatmul.mubr.bf16.gmra.mrb[0].mxu0 %v313
    %v487 = vpop.f32.mrb[0].mxu0
    %v488 = vadd.f32 %v110, %v487
    %v489 = vpop.f32.mrb[0].mxu0
    %v490 = vpop.f32.mrb[0].mxu0
    %v491 = vadd.f32 %v110, %v490
    %v492 = vpop.f32.mrb[0].mxu0
    %493 = vmatprep.mubr.bf16.mxu0 0
    %494 = vmatmul.mubr.bf16.gmra.mrb[0].mxu0 %v316
    %v495 = vpop.f32.mrb[0].mxu0
    %v496 = vadd.f32 %v110, %v495
    %v497 = vpop.f32.mrb[0].mxu0
    %v498 = vpop.f32.mrb[0].mxu0
    %v499 = vadd.f32 %v110, %v498
    %v500 = vpop.f32.mrb[0].mxu0
    %501 = vmatprep.mubr.bf16.mxu0 0
    %502 = vmatmul.mubr.bf16.gmra.mrb[0].mxu0 %v319
    %v503 = vpop.f32.mrb[0].mxu0
    %v504 = vadd.f32 %v110, %v503
    %v505 = vpop.f32.mrb[0].mxu0
    %v506 = vpop.f32.mrb[0].mxu0
    %v507 = vadd.f32 %v110, %v506
    %v508 = vpop.f32.mrb[0].mxu0
    %509 = vmatprep.mubr.bf16.mxu0 0
    %510 = vmatmul.mubr.bf16.gmra.mrb[0].mxu0 %v322
    %v511 = vpop.f32.mrb[0].mxu0
    %v512 = vadd.f32 %v110, %v511
    %v513 = vpop.f32.mrb[0].mxu0
    %v514 = vpop.f32.mrb[0].mxu0
    %v515 = vadd.f32 %v110, %v514
    %v516 = vpop.f32.mrb[0].mxu0
    %517 = vmatprep.mubr.bf16.mxu0 0
    %518 = vmatmul.mubr.bf16.gmra.mrb[0].mxu0 %v325
    %v519 = vpop.f32.mrb[0].mxu0
    %v520 = vadd.f32 %v110, %v519
    %v521 = vpop.f32.mrb[0].mxu0
    %v522 = vpop.f32.mrb[0].mxu0
    %v523 = vadd.f32 %v110, %v522
    %v524 = vpop.f32.mrb[0].mxu0
    %525 = vmatprep.mubr.bf16.mxu0 0
    %526 = vmatmul.mubr.bf16.gmra.mrb[0].mxu0 %v328
    %v527 = vpop.f32.mrb[0].mxu0
    %v528 = vadd.f32 %v110, %v527
    %v529 = vpop.f32.mrb[0].mxu0
    %v530 = vpop.f32.mrb[0].mxu0
    %v531 = vadd.f32 %v110, %v530
    %v532 = vpop.f32.mrb[0].mxu0
    %533 = vmatprep.mubr.bf16.mxu0 0
    %534 = vmatmul.mubr.bf16.gmra.mrb[0].mxu0 %v331
    %v535 = vpop.f32.mrb[0].mxu0
    %v536 = vadd.f32 %v110, %v535
    %v537 = vpop.f32.mrb[0].mxu0
    %v538 = vpop.f32.mrb[0].mxu0
    %v539 = vadd.f32 %v110, %v538
    %v540 = vpop.f32.mrb[0].mxu0
    %541 = vmatprep.mubr.bf16.mxu0 0
    %542 = vmatmul.mubr.bf16.gmra.mrb[0].mxu0 %v334
    %v543 = vpop.f32.mrb[0].mxu0
    %v544 = vadd.f32 %v110, %v543
    %v545 = vpop.f32.mrb[0].mxu0
    %v546 = vpop.f32.mrb[0].mxu0
    %v547 = vadd.f32 %v110, %v546
    %v548 = vpop.f32.mrb[0].mxu0
    %549 = vmatprep.mubr.bf16.mxu0 0
    %550 = vmatmul.mubr.bf16.gmra.mrb[0].mxu0 %v337
    %v551 = vpop.f32.mrb[0].mxu0
    %v552 = vadd.f32 %v110, %v551
    %v553 = vpop.f32.mrb[0].mxu0
    %v554 = vpop.f32.mrb[0].mxu0
    %v555 = vadd.f32 %v110, %v554
    %v556 = vpop.f32.mrb[0].mxu0
    %557 = vmatprep.mubr.bf16.mxu0 0
    %558 = vmatmul.mubr.bf16.gmra.mrb[0].mxu0 %v340
    %v559 = vpop.f32.mrb[0].mxu0
    %v560 = vadd.f32 %v110, %v559
    %v561 = vpop.f32.mrb[0].mxu0
    %v562 = vpop.f32.mrb[0].mxu0
    %v563 = vadd.f32 %v110, %v562
    %v564 = vpop.f32.mrb[0].mxu0
    %565 = vmatprep.mubr.bf16.mxu0 0
    %566 = vmatmul.mubr.bf16.gmra.mrb[0].mxu0 %v343
    %v567 = vpop.f32.mrb[0].mxu0
    %v568 = vadd.f32 %v110, %v567
    %v569 = vpop.f32.mrb[0].mxu0
    %v570 = vpop.f32.mrb[0].mxu0
    %v571 = vadd.f32 %v110, %v570
    %v572 = vpop.f32.mrb[0].mxu0
    %573 = vmatprep.mubr.bf16.mxu0 0
    %574 = vmatmul.mubr.bf16.gmra.mrb[0].mxu0 %v346
    %v575 = vpop.f32.mrb[0].mxu0
    %v576 = vadd.f32 %v110, %v575
    %v577 = vpop.f32.mrb[0].mxu0
    %v578 = vpop.f32.mrb[0].mxu0
    %v579 = vadd.f32 %v110, %v578
    %v580 = vpop.f32.mrb[0].mxu0
    %581 = vmatprep.mubr.bf16.mxu0 0
    %582 = vmatmul.mubr.bf16.gmra.mrb[0].mxu0 %v349
    %v583 = vpop.f32.mrb[0].mxu0
    %v584 = vadd.f32 %v110, %v583
    %v585 = vpop.f32.mrb[0].mxu0
    %v586 = vpop.f32.mrb[0].mxu0
    %v587 = vadd.f32 %v110, %v586
    %v588 = vpop.f32.mrb[0].mxu0
    %589 = vmatprep.mubr.bf16.mxu0 0
    %590 = vmatmul.mubr.bf16.gmra.mrb[0].mxu0 %v352
    %v591 = vpop.f32.mrb[0].mxu0
    %v592 = vadd.f32 %v110, %v591
    %v593 = vpop.f32.mrb[0].mxu0
    %v594 = vpop.f32.mrb[0].mxu0
    %v595 = vadd.f32 %v110, %v594
    %v596 = vpop.f32.mrb[0].mxu0
    %597 = vmatprep.mubr.bf16.mxu0 0
    %598 = vmatmul.mubr.bf16.gmra.mrb[0].mxu0 %v355
    %v599 = vpop.f32.mrb[0].mxu0
    %v600 = vadd.f32 %v110, %v599
    %v601 = vpop.f32.mrb[0].mxu0
    %v602 = vpop.f32.mrb[0].mxu0
    %v603 = vadd.f32 %v110, %v602
    %v604 = vpop.f32.mrb[0].mxu0
    %605 = vmatprep.mubr.bf16.mxu0 0
    %606 = vmatmul.mubr.bf16.gmra.mrb[0].mxu0 %v358
    %v607 = vpop.f32.mrb[0].mxu0
    %v608 = vadd.f32 %v110, %v607
    %v609 = vpop.f32.mrb[0].mxu0
    %v610 = vpop.f32.mrb[0].mxu0
    %v611 = vadd.f32 %v110, %v610
    %v612 = vpop.f32.mrb[0].mxu0
    %613 = vmatprep.mubr.bf16.mxu0 0
    %614 = vmatmul.mubr.bf16.gmra.mrb[0].mxu0 %v361
    %v615 = vpop.f32.mrb[0].mxu0
    %v616 = vadd.f32 %v110, %v615
    %v617 = vpop.f32.mrb[0].mxu0
    %v618 = vpop.f32.mrb[0].mxu0
    %v619 = vadd.f32 %v110, %v618
    %v620 = vpop.f32.mrb[0].mxu0
    %621 = vmatprep.mubr.bf16.mxu0 0
    %622 = vmatmul.mubr.bf16.gmra.mrb[0].mxu0 %v364
    %v623 = vpop.f32.mrb[0].mxu0
    %v624 = vadd.f32 %v110, %v623
    %v625 = vpop.f32.mrb[0].mxu0
    %v626 = vpop.f32.mrb[0].mxu0
    %v627 = vadd.f32 %v110, %v626
    %v628 = vpop.f32.mrb[0].mxu0
    %629 = vmatprep.mubr.bf16.mxu0 0
    %630 = vmatmul.mubr.bf16.gmra.mrb[0].mxu0 %v367
    %v631 = vpop.f32.mrb[0].mxu0
    %v632 = vadd.f32 %v110, %v631
    %v633 = vpop.f32.mrb[0].mxu0
    %v634 = vpop.f32.mrb[0].mxu0
    %v635 = vadd.f32 %v110, %v634
    %v636 = vpop.f32.mrb[0].mxu0
    %637 = vmatprep.mubr.bf16.mxu0 0
    %638 = vmatmul.mubr.bf16.gmra.mrb[0].mxu0 %v370
    %v639 = vpop.f32.mrb[0].mxu0
    %v640 = vadd.f32 %v110, %v639
    %v641 = vpop.f32.mrb[0].mxu0
    %v642 = vpop.f32.mrb[0].mxu0
    %v643 = vadd.f32 %v110, %v642
    %v644 = vpop.f32.mrb[0].mxu0
    %645 = vmatprep.mubr.bf16.mxu0 0
    %646 = vmatmul.mubr.bf16.gmra.mrb[0].mxu0 %v373
    %v647 = vpop.f32.mrb[0].mxu0
    %v648 = vadd.f32 %v110, %v647
    %v649 = vpop.f32.mrb[0].mxu0
    %v650 = vpop.f32.mrb[0].mxu0
    %v651 = vadd.f32 %v110, %v650
    %v652 = vpop.f32.mrb[0].mxu0
    %653 = vmatprep.mubr.bf16.mxu0 0
    %654 = vmatmul.mubr.bf16.gmra.mrb[0].mxu0 %v376
    %v655 = vpop.f32.mrb[0].mxu0
    %v656 = vadd.f32 %v110, %v655
    %v657 = vpop.f32.mrb[0].mxu0
    %v658 = vpop.f32.mrb[0].mxu0
    %v659 = vadd.f32 %v110, %v658
    %v660 = vpop.f32.mrb[0].mxu0
    %661 = vmatprep.mubr.bf16.mxu0 0
    %662 = vmatmul.mubr.bf16.gmra.mrb[0].mxu0 %v379
    %v663 = vpop.f32.mrb[0].mxu0
    %v664 = vadd.f32 %v110, %v663
    %v665 = vpop.f32.mrb[0].mxu0
    %v666 = vpop.f32.mrb[0].mxu0
    %v667 = vadd.f32 %v110, %v666
    %v668 = vpop.f32.mrb[0].mxu0
    %669 = vdwg.mxu0
    %v670 = vmax.f32 %v416, 0.0
    %v671 = vmax.f32 %v419, 0.0
    %v672 = vmax.f32 %v424, 0.0
    %v673 = vmax.f32 %v427, 0.0
    %v674 = vmax.f32 %v432, 0.0
    %v675 = vmax.f32 %v435, 0.0
    %v676 = vmax.f32 %v440, 0.0
    %v677 = vmax.f32 %v443, 0.0
    %v678 = vmax.f32 %v448, 0.0
    %v679 = vmax.f32 %v451, 0.0
    %v680 = vmax.f32 %v456, 0.0
    %v681 = vmax.f32 %v459, 0.0
    %v682 = vmax.f32 %v464, 0.0
    %v683 = vmax.f32 %v467, 0.0
    %v684 = vmax.f32 %v472, 0.0
    %v685 = vmax.f32 %v475, 0.0
    %v686 = vmax.f32 %v480, 0.0
    %v687 = vmax.f32 %v483, 0.0
    %v688 = vmax.f32 %v488, 0.0
    %v689 = vmax.f32 %v491, 0.0
    %v690 = vmax.f32 %v496, 0.0
    %v691 = vmax.f32 %v499, 0.0
    %v692 = vmax.f32 %v504, 0.0
    %v693 = vmax.f32 %v507, 0.0
    %v694 = vmax.f32 %v512, 0.0
    %v695 = vmax.f32 %v515, 0.0
    %v696 = vmax.f32 %v520, 0.0
    %v697 = vmax.f32 %v523, 0.0
    %v698 = vmax.f32 %v528, 0.0
    %v699 = vmax.f32 %v531, 0.0
    %v700 = vmax.f32 %v536, 0.0
    %v701 = vmax.f32 %v539, 0.0
    %v702 = vmax.f32 %v544, 0.0
    %v703 = vmax.f32 %v547, 0.0
    %v704 = vmax.f32 %v552, 0.0
    %v705 = vmax.f32 %v555, 0.0
    %v706 = vmax.f32 %v560, 0.0
    %v707 = vmax.f32 %v563, 0.0
    %v708 = vmax.f32 %v568, 0.0
    %v709 = vmax.f32 %v571, 0.0
    %v710 = vmax.f32 %v576, 0.0
    %v711 = vmax.f32 %v579, 0.0
    %v712 = vmax.f32 %v584, 0.0
    %v713 = vmax.f32 %v587, 0.0
    %v714 = vmax.f32 %v592, 0.0
    %v715 = vmax.f32 %v595, 0.0
    %v716 = vmax.f32 %v600, 0.0
    %v717 = vmax.f32 %v603, 0.0
    %v718 = vmax.f32 %v608, 0.0
    %v719 = vmax.f32 %v611, 0.0
    %v720 = vmax.f32 %v616, 0.0
    %v721 = vmax.f32 %v619, 0.0
    %v722 = vmax.f32 %v624, 0.0
    %v723 = vmax.f32 %v627, 0.0
    %v724 = vmax.f32 %v632, 0.0
    %v725 = vmax.f32 %v635, 0.0
    %v726 = vmax.f32 %v640, 0.0
    %v727 = vmax.f32 %v643, 0.0
    %v728 = vmax.f32 %v648, 0.0
    %v729 = vmax.f32 %v651, 0.0
    %v730 = vmax.f32 %v656, 0.0
    %v731 = vmax.f32 %v659, 0.0
    %v732 = vmax.f32 %v664, 0.0
    %v733 = vmax.f32 %v667, 0.0
    %v734 = vld [vmem:[%s2] sm:$0xf]
    %v735 = vpack.c.bf16 %v671, %v670
    %v736 = vpack.c.bf16 %v673, %v672
    %v737 = vpack.c.bf16 %v675, %v674
    %v738 = vpack.c.bf16 %v677, %v676
    %v739 = vpack.c.bf16 %v679, %v678
    %v740 = vpack.c.bf16 %v681, %v680
    %v741 = vpack.c.bf16 %v683, %v682
    %v742 = vpack.c.bf16 %v685, %v684
    %v743 = vpack.c.bf16 %v687, %v686
    %v744 = vpack.c.bf16 %v689, %v688
    %v745 = vpack.c.bf16 %v691, %v690
    %v746 = vpack.c.bf16 %v693, %v692
    %v747 = vpack.c.bf16 %v695, %v694
    %v748 = vpack.c.bf16 %v697, %v696
    %v749 = vpack.c.bf16 %v699, %v698
    %v750 = vpack.c.bf16 %v701, %v700
    %v751 = vpack.c.bf16 %v703, %v702
    %v752 = vpack.c.bf16 %v705, %v704
    %v753 = vpack.c.bf16 %v707, %v706
    %v754 = vpack.c.bf16 %v709, %v708
    %v755 = vpack.c.bf16 %v711, %v710
    %v756 = vpack.c.bf16 %v713, %v712
    %v757 = vpack.c.bf16 %v715, %v714
    %v758 = vpack.c.bf16 %v717, %v716
    %v759 = vpack.c.bf16 %v719, %v718
    %v760 = vpack.c.bf16 %v721, %v720
    %v761 = vpack.c.bf16 %v723, %v722
    %v762 = vpack.c.bf16 %v725, %v724
    %v763 = vpack.c.bf16 %v727, %v726
    %v764 = vpack.c.bf16 %v729, %v728
    %v765 = vpack.c.bf16 %v731, %v730
    %v766 = vpack.c.bf16 %v733, %v732
    %v769 = vunpack.c.l.s4 1966171168
    %v770 = vunpack.c.0.s8 %v769
    %v771 = vlaneseq
    %v772 = vshrl.u32 %v771, 7
    %v773 = vsub.s32 %v770, %v772
    %v774 = vrot.slane %v734, %v773
    %v775 = vcombine.high %v774, %v774
    %v777 = vunpack.c.l.s4 1966171168
    %v778 = vunpack.c.0.s8 %v777
    %v779 = vlaneseq
    %v780 = vshrl.u32 %v779, 7
    %v781 = vsub.s32 %v778, %v780
    %v782 = vrot.slane %v774, %v781
    %v784 = vunpack.c.l.s4 1966171168
    %v785 = vunpack.c.0.s8 %v784
    %v786 = vlaneseq
    %v787 = vshrl.u32 %v786, 7
    %v788 = vsub.s32 %v785, %v787
    %v789 = vrot.slane %v775, %v788
    %v790 = vcombine.high %v782, %v782
    %v791 = vcombine.high %v789, %v789
    %796 = vmatprep.subr.bf16.mxu0 0
    %797 = vmatpush1.bf16.msra.mxu0 %v735
    %798 = vmatprep.subr.bf16.mxu0 0
    %799 = vmatpush1.bf16.msra.mxu0 %v736
    %800 = vmatprep.subr.bf16.mxu0 0
    %801 = vmatpush1.bf16.msra.mxu0 %v737
    %802 = vmatprep.subr.bf16.mxu0 0
    %803 = vmatpush1.bf16.msra.mxu0 %v738
    %804 = vmatprep.subr.bf16.mxu0 0
    %805 = vmatpush1.bf16.msra.mxu0 %v739
    %806 = vmatprep.subr.bf16.mxu0 0
    %807 = vmatpush1.bf16.msra.mxu0 %v740
    %808 = vmatprep.subr.bf16.mxu0 0
    %809 = vmatpush1.bf16.msra.mxu0 %v741
    %810 = vmatprep.subr.bf16.mxu0 0
    %811 = vmatpush1.bf16.msra.mxu0 %v742
    %812 = vmatprep.subr.bf16.mxu0 0
    %813 = vmatpush1.bf16.msra.mxu0 %v743
    %814 = vmatprep.subr.bf16.mxu0 0
    %815 = vmatpush1.bf16.msra.mxu0 %v744
    %816 = vmatprep.subr.bf16.mxu0 0
    %817 = vmatpush1.bf16.msra.mxu0 %v745
    %818 = vmatprep.subr.bf16.mxu0 0
    %819 = vmatpush1.bf16.msra.mxu0 %v746
    %820 = vmatprep.subr.bf16.mxu0 0
    %821 = vmatpush1.bf16.msra.mxu0 %v747
    %822 = vmatprep.subr.bf16.mxu0 0
    %823 = vmatpush1.bf16.msra.mxu0 %v748
    %824 = vmatprep.subr.bf16.mxu0 0
    %825 = vmatpush1.bf16.msra.mxu0 %v749
    %826 = vmatprep.subr.bf16.mxu0 0
    %827 = vmatpush1.bf16.msra.mxu0 %v750
    %828 = vmatprep.mubr.bf16.mxu0 %v789
    %829 = vmatmul.mubr.bf16.gmra.mrb[0].mxu0 %v782
    %v830 = vpop.f32.mrb[0].mxu0
    %v831 = vadd.f32 0.0, %v830
    %v832 = vpop.f32.mrb[0].mxu0
    %v833 = vpop.f32.mrb[0].mxu0
    %v834 = vpop.f32.mrb[0].mxu0
    %835 = vdwg.mxu0
    %836 = vmatprep.subr.bf16.mxu0 0
    %837 = vmatpush1.bf16.msra.mxu0 %v751
    %838 = vmatprep.subr.bf16.mxu0 0
    %839 = vmatpush1.bf16.msra.mxu0 %v752
    %840 = vmatprep.subr.bf16.mxu0 0
    %841 = vmatpush1.bf16.msra.mxu0 %v753
    %842 = vmatprep.subr.bf16.mxu0 0
    %843 = vmatpush1.bf16.msra.mxu0 %v754
    %844 = vmatprep.subr.bf16.mxu0 0
    %845 = vmatpush1.bf16.msra.mxu0 %v755
    %846 = vmatprep.subr.bf16.mxu0 0
    %847 = vmatpush1.bf16.msra.mxu0 %v756
    %848 = vmatprep.subr.bf16.mxu0 0
    %849 = vmatpush1.bf16.msra.mxu0 %v757
    %850 = vmatprep.subr.bf16.mxu0 0
    %851 = vmatpush1.bf16.msra.mxu0 %v758
    %852 = vmatprep.subr.bf16.mxu0 0
    %853 = vmatpush1.bf16.msra.mxu0 %v759
    %854 = vmatprep.subr.bf16.mxu0 0
    %855 = vmatpush1.bf16.msra.mxu0 %v760
    %856 = vmatprep.subr.bf16.mxu0 0
    %857 = vmatpush1.bf16.msra.mxu0 %v761
    %858 = vmatprep.subr.bf16.mxu0 0
    %859 = vmatpush1.bf16.msra.mxu0 %v762
    %860 = vmatprep.subr.bf16.mxu0 0
    %861 = vmatpush1.bf16.msra.mxu0 %v763
    %862 = vmatprep.subr.bf16.mxu0 0
    %863 = vmatpush1.bf16.msra.mxu0 %v764
    %864 = vmatprep.subr.bf16.mxu0 0
    %865 = vmatpush1.bf16.msra.mxu0 %v765
    %866 = vmatprep.subr.bf16.mxu0 0
    %867 = vmatpush1.bf16.msra.mxu0 %v766
    %868 = vmatprep.mubr.bf16.mxu0 %v791
    %869 = vmatmul.mubr.bf16.gmra.mrb[0].mxu0 %v790
    %v870 = vpop.f32.mrb[0].mxu0
    %v871 = vadd.f32 %v831, %v870
    %v872 = vpop.f32.mrb[0].mxu0
    %v873 = vpop.f32.mrb[0].mxu0
    %v874 = vpop.f32.mrb[0].mxu0
    %875 = vdwg.mxu0
    %v876 = vpack.c.bf16 %v871, %v871
    %v877 = vld [vmem:[%s5] sm:$0xf]
    %v878 = vld [vmem:[%s5 + $0x4] sm:$0xf]
    %v879 = vld [vmem:[%s5 + $0x8] sm:$0xf]
    %v880 = vld [vmem:[%s5 + $0xc] sm:$0xf]
    %v881 = vld [vmem:[%s5 + $0x10] sm:$0xf]
    %v882 = vld [vmem:[%s5 + $0x14] sm:$0xf]
    %v883 = vld [vmem:[%s5 + $0x18] sm:$0xf]
    %v884 = vld [vmem:[%s5 + $0x1c] sm:$0xf]
    %v885 = vld [vmem:[%s5 + $0x20] sm:$0xf]
    %v886 = vld [vmem:[%s5 + $0x24] sm:$0xf]
    %v887 = vld [vmem:[%s5 + $0x28] sm:$0xf]
    %v888 = vld [vmem:[%s5 + $0x2c] sm:$0xf]
    %v889 = vld [vmem:[%s5 + $0x30] sm:$0xf]
    %v890 = vld [vmem:[%s5 + $0x34] sm:$0xf]
    %v891 = vld [vmem:[%s5 + $0x38] sm:$0xf]
    %v892 = vld [vmem:[%s5 + $0x3c] sm:$0xf]
    %v893 = vld [vmem:[%s6] sm:$0x1]
    %v895 = vlaneseq
    %v896 = vshrl.u32 %v895, 7
    %v897 = vsub.s32 0, %v896
    %v898 = vrot.slane %v893, %v897
    %v916 = vunpack.c.l.b16 %v877
    %v917 = vunpack.c.l.b16 %v878
    %v918 = vunpack.c.l.b16 %v879
    %v919 = vunpack.c.l.b16 %v880
    %v920 = vunpack.c.l.b16 %v881
    %v921 = vunpack.c.l.b16 %v882
    %v922 = vunpack.c.l.b16 %v883
    %v923 = vunpack.c.l.b16 %v884
    %v924 = vunpack.c.l.b16 %v885
    %v925 = vunpack.c.l.b16 %v886
    %v926 = vunpack.c.l.b16 %v887
    %v927 = vunpack.c.l.b16 %v888
    %v928 = vunpack.c.l.b16 %v889
    %v929 = vunpack.c.l.b16 %v890
    %v930 = vunpack.c.l.b16 %v891
    %v931 = vunpack.c.l.b16 %v892
    %v932 = vpack.c.b16 %v917, %v916
    %v933 = vpack.c.b16 %v919, %v918
    %v934 = vpack.c.b16 %v921, %v920
    %v935 = vpack.c.b16 %v923, %v922
    %v936 = vpack.c.b16 %v925, %v924
    %v937 = vpack.c.b16 %v927, %v926
    %v938 = vpack.c.b16 %v929, %v928
    %v939 = vpack.c.b16 %v931, %v930
    %948 = vmatprep.subr.bf16.mxu0 0
    %949 = vmatpush1.bf16.msra.mxu0 %v932
    %950 = vmatprep.subr.bf16.mxu0 0
    %951 = vmatpush1.bf16.msra.mxu0 %v933
    %952 = vmatprep.subr.bf16.mxu0 0
    %953 = vmatpush1.bf16.msra.mxu0 %v934
    %954 = vmatprep.subr.bf16.mxu0 0
    %955 = vmatpush1.bf16.msra.mxu0 %v935
    %956 = vmatprep.subr.bf16.mxu0 0
    %957 = vmatpush1.bf16.msra.mxu0 %v936
    %958 = vmatprep.subr.bf16.mxu0 0
    %959 = vmatpush1.bf16.msra.mxu0 %v937
    %960 = vmatprep.subr.bf16.mxu0 0
    %961 = vmatpush1.bf16.msra.mxu0 %v938
    %962 = vmatprep.subr.bf16.mxu0 0
    %963 = vmatpush1.bf16.msra.mxu0 %v939
    %964 = vmatprep.subr.bf16.mxu0 0
    %965 = vmatpush1.bf16.msra.mxu0 0
    %966 = vmatprep.subr.bf16.mxu0 0
    %967 = vmatpush1.bf16.msra.mxu0 0
    %968 = vmatprep.subr.bf16.mxu0 0
    %969 = vmatpush1.bf16.msra.mxu0 0
    %970 = vmatprep.subr.bf16.mxu0 0
    %971 = vmatpush1.bf16.msra.mxu0 0
    %972 = vmatprep.subr.bf16.mxu0 0
    %973 = vmatpush1.bf16.msra.mxu0 0
    %974 = vmatprep.subr.bf16.mxu0 0
    %975 = vmatpush1.bf16.msra.mxu0 0
    %976 = vmatprep.subr.bf16.mxu0 0
    %977 = vmatpush1.bf16.msra.mxu0 0
    %978 = vmatprep.subr.bf16.mxu0 0
    %979 = vmatpush1.bf16.msra.mxu0 0
    %980 = vmatprep.mubr.bf16.mxu0 0
    %981 = vmatmul.mubr.bf16.gmra.mrb[0].mxu0 %v876
    %v982 = vpop.f32.mrb[0].mxu0
    %v983 = vadd.f32 %v898, %v982
    %v984 = vpop.f32.mrb[0].mxu0
    %v985 = vpop.f32.mrb[0].mxu0
    %v986 = vpop.f32.mrb[0].mxu0
    %987 = vdwg.mxu0
    %v988 = vpack.c.bf16 %v983, %v983
    %v989 = vld [vmem:[%s7] sm:$0xf]
    %v990 = vld [vmem:[%s7 + $0x4] sm:$0xf]
    %v991 = vld [vmem:[%s7 + $0x8] sm:$0xf]
    %v992 = vld [vmem:[%s7 + $0xc] sm:$0xf]
    %v993 = vld [vmem:[%s7 + $0x10] sm:$0xf]
    %v994 = vld [vmem:[%s7 + $0x14] sm:$0xf]
    %v995 = vld [vmem:[%s7 + $0x18] sm:$0xf]
    %v996 = vld [vmem:[%s7 + $0x1c] sm:$0xf]
    %v997 = vld [vmem:[%s7 + $0x20] sm:$0xf]
    %v998 = vld [vmem:[%s7 + $0x24] sm:$0xf]
    %v999 = vld [vmem:[%s7 + $0x28] sm:$0xf]
    %v1000 = vld [vmem:[%s7 + $0x2c] sm:$0xf]
    %v1001 = vld [vmem:[%s7 + $0x30] sm:$0xf]
    %v1002 = vld [vmem:[%s7 + $0x34] sm:$0xf]
    %v1003 = vld [vmem:[%s7 + $0x38] sm:$0xf]
    %v1004 = vld [vmem:[%s7 + $0x3c] sm:$0xf]
    %v1005 = vld [vmem:[%s1] sm:$0x3]
    %v1006 = vpack.c.bf16 %v1005, %v1005
    %v1007 = vld [vmem:[%s8] sm:$0xf]
    %vm1008 = vcmask 64512
    %v1010 = vsel %vm1008, %v1006, 0
    %vm1012 = vcmask 1043456
    %v1014 = vsel %vm1012, %v1007, 0
    %1016 = vmatprep.subr.bf16.mxu0 0
    %1017 = vmatpush1.bf16.msra.mxu0 %v1014
    %1018 = vmatprep.subr.bf16.mxu0 0
    %1019 = vmatpush1.bf16.msra.mxu0 0
    %1020 = vmatprep.subr.bf16.mxu0 0
    %1021 = vmatpush1.bf16.msra.mxu0 0
    %1022 = vmatprep.subr.bf16.mxu0 0
    %1023 = vmatpush1.bf16.msra.mxu0 0
    %1024 = vmatprep.subr.bf16.mxu0 0
    %1025 = vmatpush1.bf16.msra.mxu0 0
    %1026 = vmatprep.subr.bf16.mxu0 0
    %1027 = vmatpush1.bf16.msra.mxu0 0
    %1028 = vmatprep.subr.bf16.mxu0 0
    %1029 = vmatpush1.bf16.msra.mxu0 0
    %1030 = vmatprep.subr.bf16.mxu0 0
    %1031 = vmatpush1.bf16.msra.mxu0 0
    %1032 = vmatprep.subr.bf16.mxu0 0
    %1033 = vmatpush1.bf16.msra.mxu0 0
    %1034 = vmatprep.subr.bf16.mxu0 0
    %1035 = vmatpush1.bf16.msra.mxu0 0
    %1036 = vmatprep.subr.bf16.mxu0 0
    %1037 = vmatpush1.bf16.msra.mxu0 0
    %1038 = vmatprep.subr.bf16.mxu0 0
    %1039 = vmatpush1.bf16.msra.mxu0 0
    %1040 = vmatprep.subr.bf16.mxu0 0
    %1041 = vmatpush1.bf16.msra.mxu0 0
    %1042 = vmatprep.subr.bf16.mxu0 0
    %1043 = vmatpush1.bf16.msra.mxu0 0
    %1044 = vmatprep.subr.bf16.mxu0 0
    %1045 = vmatpush1.bf16.msra.mxu0 0
    %1046 = vmatprep.subr.bf16.mxu0 0
    %1047 = vmatpush1.bf16.msra.mxu0 0
    %1048 = vmatprep.mubr.bf16.mxu0 0
    %1049 = vmatmul.mubr.bf16.gmra.mrb[0].mxu0 %v1010
    %v1050 = vpop.f32.mrb[0].mxu0
    %v1051 = vadd.f32 0.0, %v1050
    %v1052 = vpop.f32.mrb[0].mxu0
    %v1053 = vpop.f32.mrb[0].mxu0
    %v1054 = vpop.f32.mrb[0].mxu0
    %1055 = vdwg.mxu0
    %v1072 = vunpack.c.l.b16 %v989
    %v1073 = vunpack.c.l.b16 %v990
    %v1074 = vunpack.c.l.b16 %v991
    %v1075 = vunpack.c.l.b16 %v992
    %v1076 = vunpack.c.l.b16 %v993
    %v1077 = vunpack.c.l.b16 %v994
    %v1078 = vunpack.c.l.b16 %v995
    %v1079 = vunpack.c.l.b16 %v996
    %v1080 = vunpack.c.l.b16 %v997
    %v1081 = vunpack.c.l.b16 %v998
    %v1082 = vunpack.c.l.b16 %v999
    %v1083 = vunpack.c.l.b16 %v1000
    %v1084 = vunpack.c.l.b16 %v1001
    %v1085 = vunpack.c.l.b16 %v1002
    %v1086 = vunpack.c.l.b16 %v1003
    %v1087 = vunpack.c.l.b16 %v1004
    %v1088 = vpack.c.b16 %v1073, %v1072
    %v1089 = vpack.c.b16 %v1075, %v1074
    %v1090 = vpack.c.b16 %v1077, %v1076
    %v1091 = vpack.c.b16 %v1079, %v1078
    %v1092 = vpack.c.b16 %v1081, %v1080
    %v1093 = vpack.c.b16 %v1083, %v1082
    %v1094 = vpack.c.b16 %v1085, %v1084
    %v1095 = vpack.c.b16 %v1087, %v1086
    %1104 = vmatprep.subr.bf16.mxu0 0
    %1105 = vmatpush1.bf16.msra.mxu0 %v1088
    %1106 = vmatprep.subr.bf16.mxu0 0
    %1107 = vmatpush1.bf16.msra.mxu0 %v1089
    %1108 = vmatprep.subr.bf16.mxu0 0
    %1109 = vmatpush1.bf16.msra.mxu0 %v1090
    %1110 = vmatprep.subr.bf16.mxu0 0
    %1111 = vmatpush1.bf16.msra.mxu0 %v1091
    %1112 = vmatprep.subr.bf16.mxu0 0
    %1113 = vmatpush1.bf16.msra.mxu0 %v1092
    %1114 = vmatprep.subr.bf16.mxu0 0
    %1115 = vmatpush1.bf16.msra.mxu0 %v1093
    %1116 = vmatprep.subr.bf16.mxu0 0
    %1117 = vmatpush1.bf16.msra.mxu0 %v1094
    %1118 = vmatprep.subr.bf16.mxu0 0
    %1119 = vmatpush1.bf16.msra.mxu0 %v1095
    %1120 = vmatprep.subr.bf16.mxu0 0
    %1121 = vmatpush1.bf16.msra.mxu0 0
    %1122 = vmatprep.subr.bf16.mxu0 0
    %1123 = vmatpush1.bf16.msra.mxu0 0
    %1124 = vmatprep.subr.bf16.mxu0 0
    %1125 = vmatpush1.bf16.msra.mxu0 0
    %1126 = vmatprep.subr.bf16.mxu0 0
    %1127 = vmatpush1.bf16.msra.mxu0 0
    %1128 = vmatprep.subr.bf16.mxu0 0
    %1129 = vmatpush1.bf16.msra.mxu0 0
    %1130 = vmatprep.subr.bf16.mxu0 0
    %1131 = vmatpush1.bf16.msra.mxu0 0
    %1132 = vmatprep.subr.bf16.mxu0 0
    %1133 = vmatpush1.bf16.msra.mxu0 0
    %1134 = vmatprep.subr.bf16.mxu0 0
    %1135 = vmatpush1.bf16.msra.mxu0 0
    %1136 = vmatprep.mubr.bf16.mxu0 0
    %1137 = vmatmul.mubr.bf16.gmra.mrb[0].mxu0 %v988
    %v1138 = vpop.f32.mrb[0].mxu0
    %v1139 = vadd.f32 %v1051, %v1138
    %v1140 = vpop.f32.mrb[0].mxu0
    %v1141 = vpop.f32.mrb[0].mxu0
    %v1142 = vpop.f32.mrb[0].mxu0
    %1143 = vdwg.mxu0
    %v1144 = vld [vmem:[%s9] sm:$0x1]
    %v1146 = vlaneseq
    %v1147 = vshrl.u32 %v1146, 7
    %v1148 = vsub.s32 0, %v1147
    %v1149 = vrot.slane %v1144, %v1148
    %v1151 = vadd.f32 %v1139, %v1149
    %1152 = vst [vmem:[#allocation2] sm:$0x3] %v1151
    // Predicated region
    $region42: #{simple_baseline_net.1} parent=1 // pred_check
      _
    $region43: #{simple_baseline_net.1} parent=1 // pred_check_branch
      %1154 = sbr.rel (0) target = $region45
    $region44: #{simple_baseline_net.1} parent=1 // pred_region
      %s1156 = ssub.s32 32, 32
      %1157 = vsyncadd [#allocation3], %s1156
      %s1159 = sshll.u32 [#allocation2], 4
      %s1160 = int_to_ptr.vmem [resolvable:$true] %s1159
      %1162 = dma.vmem_to_hbm [thread:$0]  %s1160, 32, %s10, [#allocation3]
    $region45: #{simple_baseline_net.1} parent=1 // pred_fallthru
      _
    // Predicated region
    $region46: #{simple_baseline_net.1} parent=1 // pred_check
      _
    $region47: #{simple_baseline_net.1} parent=1 // pred_check_branch
      %1164 = sbr.rel (0) target = $region49
    $region48: #{simple_baseline_net.1} parent=1 // pred_region
      %1165 = dma.done [#allocation3], 32
    $region49: #{simple_baseline_net.1} parent=1 // pred_fallthru
      _
    %1166 = vsyncpa [#allocation3], 1

</llo_original>
